<compile_context>
chip_gen: v5e
topology: v5e:2x2
jax: 0.10.0
libtpu: 0.0.40
codegen_flags: <defaults>
</compile_context>

<pallas_src>
import functools

import jax
import jax.numpy as jnp
from jax import lax
from jax.experimental import pallas as pl
from jax.experimental.pallas import tpu as pltpu


def _rmsnorm_kernel(x_ref, w_ref, o_ref, *, eps: float, zero_centered: bool):
    # x_ref: (TM, H) rows (native input dtype); w_ref: (1, H) weight; o_ref: (TM, H).
    w = w_ref[...]
    if zero_centered:
        w = w + 1            # add in the weight dtype (matches reference), then upcast
    w = w.astype(jnp.float32)

    # Pass 1: per-row mean of squares.  Do NOT bind an f32 copy of the tile
    # here — re-reading x_ref below keeps the live VMEM/vreg footprint small.
    var = jnp.mean(jnp.square(x_ref[...].astype(jnp.float32)), axis=-1, keepdims=True)
    inv = lax.rsqrt(var + eps)

    # Pass 2: reload from VMEM, scale, and cast to the output dtype in-kernel.
    o_ref[...] = (x_ref[...].astype(jnp.float32) * inv * w).astype(o_ref.dtype)


def _vmem_capacity_bytes() -> int:
    try:
        return int(pltpu.get_tpu_info().vmem_capacity_bytes)
    except Exception:
        return 64 * 1024 * 1024  # conservative (v7x per-TC VMEM)


def _row_pack(dtype) -> int:
    # sublane pack factor: 8 for 4-byte, 16 for 2-byte, 32 for 1-byte dtypes.
    return {4: 8, 2: 16, 1: 32}.get(jnp.dtype(dtype).itemsize, 8)


def _round_up(n: int, m: int) -> int:
    return ((n + m - 1) // m) * m


def _pick_block_rows(rows: int, hidden: int, x_dtype, out_dtype, vmem_capacity: int) -> int:
    x_b = jnp.dtype(x_dtype).itemsize
    o_b = jnp.dtype(out_dtype).itemsize
    # Per row: double-buffered input + output tiles plus ~1x f32 in-kernel temporary.
    bytes_per_row = hidden * (2 * x_b + 2 * o_b + 4)
    budget = vmem_capacity // 2          # leave headroom for compiler scratch
    br = max(1, budget // bytes_per_row)
    # Byte-based cap: past ~32 MiB of in+out traffic per grid step the fixed
    # ~0.35 us per-step overhead is already <1-2% on every generation.
    step_cap_bytes = 32 * 1024 * 1024
    br = min(br, max(1, step_cap_bytes // (hidden * (x_b + o_b))))
    pack = max(_row_pack(x_dtype), _row_pack(out_dtype))
    br = max(pack, (br // pack) * pack)  # multiple of the sublane pack factor
    br = min(br, _round_up(rows, pack))  # don't exceed the problem size
    return int(br)


def rms_norm(x: jax.Array, weight: jax.Array, *, eps: float = 1e-5,
             zero_centered: bool = False, block_rows: int | None = None,
             out_dtype=None) -> jax.Array:
    """RMSNorm over the last axis of `x`, scaled by `weight` (shape (hidden,)).

    By default the output dtype follows `weight.dtype` (the "training" dtype),
    matching the torch module which converts the input to the weight dtype.
    Pass `out_dtype` explicitly (e.g. bf16) when the weight is stored in f32 but
    activations are bf16, to avoid doubling the HBM write traffic.
    """
    hidden = weight.shape[-1]
    assert x.shape[-1] == hidden
    if out_dtype is None:
        out_dtype = weight.dtype
    orig_shape = x.shape

    # No wrapper-side dtype cast: all casting is fused into the kernel.
    x2d = x.reshape(-1, hidden)
    rows = x2d.shape[0]
    w2d = weight.reshape(1, hidden)

    vmem_capacity = _vmem_capacity_bytes()
    if block_rows is None:
        block_rows = _pick_block_rows(rows, hidden, x2d.dtype, out_dtype, vmem_capacity)
    grid_rows = pl.cdiv(rows, block_rows)   # partial last block handled by Pallas

    kernel = functools.partial(_rmsnorm_kernel, eps=eps, zero_centered=zero_centered)

    def call(row_semantics):
        return pl.pallas_call(
            kernel,
            out_shape=jax.ShapeDtypeStruct((rows, hidden), out_dtype),
            grid_spec=pltpu.PrefetchScalarGridSpec(
                num_scalar_prefetch=0,
                grid=(grid_rows,),
                in_specs=[
                    pl.BlockSpec((block_rows, hidden), lambda i: (i, 0)),
                    pl.BlockSpec((1, hidden), lambda i: (0, 0)),
                ],
                out_specs=pl.BlockSpec((block_rows, hidden), lambda i: (i, 0)),
            ),
            compiler_params=pltpu.CompilerParams(
                dimension_semantics=(row_semantics,),
                vmem_limit_bytes=int(vmem_capacity * 7 // 8),
            ),
        )(x2d, w2d)

    if grid_rows >= 2:
        # Shard the row grid across TensorCores (2 TCs on v7x). Fall back to the
        # plain semantics if the core-parallel lowering is unsupported here.
        try:
            out2d = call(pltpu.CORE_PARALLEL)
        except Exception:
            out2d = call("parallel")
    else:
        out2d = call("arbitrary")

    return out2d.reshape(orig_shape)


def _rms_norm_ref(x, weight, eps=1e-5, zero_centered=False):
    w = weight + 1 if zero_centered else weight
    xf = x.astype(jnp.float32)
    var = jnp.mean(jnp.square(xf), axis=-1, keepdims=True)
    return (xf * lax.rsqrt(var + eps) * w.astype(jnp.float32)).astype(weight.dtype)


# TODO(synk): backward pass (FusedRMSNorm.backward + grad accumulation) not implemented;
# forward only.

if __name__ == "__main__":
    key = jax.random.PRNGKey(0)
    batch, seq, hidden = 2, 8, 128
    eps = 1e-5

    x = jax.random.normal(key, (batch, seq, hidden), dtype=jnp.float32)

    # 1) Default RMSNorm: weight init is ones (init_ones_), f32 training dtype.
    w = jnp.ones((hidden,), dtype=jnp.float32)
    out = jax.block_until_ready(rms_norm(x, w, eps=eps, zero_centered=False))
    ref = _rms_norm_ref(x, w, eps=eps, zero_centered=False)
    assert out.shape == x.shape and out.dtype == w.dtype
    assert jnp.allclose(out, ref, atol=1e-5, rtol=1e-5), "mismatch vs reference (f32)"

    # 2) zero_centered variant (init_zeros_) with bf16 weight: exercises the fused
    #    in-kernel input cast (output follows the weight "training" dtype, as in torch).
    wz = jnp.zeros((hidden,), dtype=jnp.bfloat16)
    out_z = jax.block_until_ready(rms_norm(x, wz, eps=eps, zero_centered=True))
    ref_z = _rms_norm_ref(x, wz, eps=eps, zero_centered=True)
    assert out_z.shape == x.shape and out_z.dtype == jnp.bfloat16
    assert jnp.allclose(out_z.astype(jnp.float32), ref_z.astype(jnp.float32),
                        atol=2e-2, rtol=2e-2), "mismatch vs reference (zero_centered bf16)"

    # 3) bf16 activations with an f32 weight but an explicit bf16 output
    #    (avoids the accidental f32 write the review flagged).
    xb = x.astype(jnp.bfloat16)
    out_b = jax.block_until_ready(rms_norm(xb, w, eps=eps, out_dtype=jnp.bfloat16))
    ref_b = _rms_norm_ref(xb, w, eps=eps).astype(jnp.bfloat16)
    assert out_b.dtype == jnp.bfloat16
    assert jnp.allclose(out_b.astype(jnp.float32), ref_b.astype(jnp.float32),
                        atol=2e-2, rtol=2e-2), "mismatch vs reference (bf16 out_dtype)"

    # 4) Multi-step grid with a ragged last block: exercises the core-parallel /
    #    fallback path and masked writeback of the partial tile.
    x3 = jax.random.normal(jax.random.PRNGKey(1), (3, 5, hidden), dtype=jnp.float32)
    out3 = jax.block_until_ready(rms_norm(x3, w, eps=eps, block_rows=8))
    ref3 = _rms_norm_ref(x3, w, eps=eps)
    assert jnp.allclose(out3, ref3, atol=1e-5, rtol=1e-5), "mismatch vs reference (ragged grid)"

    print("KERNEL_OK")
</pallas_src>

<mosaic_0001>
module attributes {stable_mosaic.version = 11 : i64} {
  func.func @_rmsnorm_kernel(%arg0: i32, %arg1: memref<16x128xf32, #tpu.memory_space<vmem>>, %arg2: memref<1x128xf32, #tpu.memory_space<vmem>>, %arg3: memref<16x128xf32, #tpu.memory_space<vmem>>) attributes {dimension_semantics = [#tpu.dimension_semantics<arbitrary>], iteration_bounds = array<i64: 1>, scalar_prefetch = 0 : i64, scratch_operands = 0 : i64, tpu.core_type = #tpu.core_type<tc>, window_params = [{transform_indices = @transform_0, window_bounds = array<i64: 16, 128>}, {pipeline_mode = #tpu.pipeline_mode<synchronous>, transform_indices = @transform_1, window_bounds = array<i64: 1, 128>}, {transform_indices = @transform_2, window_bounds = array<i64: 16, 128>}]} {
    %c0 = arith.constant 0 : index
    %c0_0 = arith.constant 0 : index
    %0 = vector.load %arg2[%c0, %c0_0] : memref<1x128xf32, #tpu.memory_space<vmem>>, vector<1x128xf32>
    %c0_1 = arith.constant 0 : index
    %c0_2 = arith.constant 0 : index
    %1 = vector.load %arg1[%c0_1, %c0_2] : memref<16x128xf32, #tpu.memory_space<vmem>>, vector<16x128xf32>
    %2 = arith.mulf %1, %1 : vector<16x128xf32>
    %cst = arith.constant dense<0.000000e+00> : vector<16xf32>
    %3 = vector.multi_reduction <add>, %2, %cst [1] : vector<16x128xf32> to vector<16xf32>
    %4 = vector.shape_cast %3 : vector<16xf32> to vector<16x1xf32>
    %cst_3 = arith.constant 1.280000e+02 : f32
    %5 = vector.broadcast %cst_3 : f32 to vector<16x1xf32>
    %6 = arith.divf %4, %5 : vector<16x1xf32>
    %cst_4 = arith.constant 9.99999974E-6 : f32
    %7 = vector.broadcast %cst_4 : f32 to vector<16x1xf32>
    %8 = arith.addf %6, %7 : vector<16x1xf32>
    %9 = math.rsqrt %8 : vector<16x1xf32>
    %c0_5 = arith.constant 0 : index
    %c0_6 = arith.constant 0 : index
    %10 = vector.load %arg1[%c0_5, %c0_6] : memref<16x128xf32, #tpu.memory_space<vmem>>, vector<16x128xf32>
    %11 = vector.broadcast %9 : vector<16x1xf32> to vector<16x128xf32>
    %12 = arith.mulf %10, %11 : vector<16x128xf32>
    %13 = vector.broadcast %0 : vector<1x128xf32> to vector<16x128xf32>
    %14 = arith.mulf %12, %13 : vector<16x128xf32>
    %c0_7 = arith.constant 0 : index
    %c0_8 = arith.constant 0 : index
    %15 = vector.load %arg3[%c0_7, %c0_8] : memref<16x128xf32, #tpu.memory_space<vmem>>, vector<16x128xf32>
    tpu.vector_store %arg3[%c0_7, %c0_8], %14 {strides = array<i32>} : memref<16x128xf32, #tpu.memory_space<vmem>>, vector<16x128xf32>,
    return
  }
  func.func @transform_0(%arg0: i32) -> (i32, i32) {
    %c0_i32 = arith.constant 0 : i32
    %c0_i32_0 = arith.constant 0 : i32
    return %arg0, %c0_i32 : i32, i32
  }
  func.func @transform_1(%arg0: i32) -> (i32, i32) {
    %c0_i32 = arith.constant 0 : i32
    %c0_i32_0 = arith.constant 0 : i32
    %c0_i32_1 = arith.constant 0 : i32
    return %c0_i32, %c0_i32_0 : i32, i32
  }
  func.func @transform_2(%arg0: i32) -> (i32, i32) {
    %c0_i32 = arith.constant 0 : i32
    %c0_i32_0 = arith.constant 0 : i32
    return %arg0, %c0_i32 : i32, i32
  }
}

</mosaic_0001>

<llo_original>
// kernel: tpu_custom_call.1
$region0: #{tpu_custom_call.1}
  #allocation0 [shape = 'u32[]', space=smem, size = 0x4, offset = 0x4, fixed_abs, tag = 'smem constant byte address 0x4 - core index']
  #allocation1 [shape = 'u32[72,128]{1,0:T(1,128)}', space=vmem, size = 0x9000, scoped, tag = 'internal scratch']
  %s0 = inlined_call_operand.hbm [shape: f32[16,128], index: 0, kind: input, shape index: {}]
  %s1 = inlined_call_operand.hbm [shape: f32[1,128], index: 1, kind: input, shape index: {}]
  %s2 = inlined_call_operand.hbm [shape: f32[16,128], index: 2, kind: output, shape index: {}]
  %s3 = sld [smem:[#allocation0]]
  $region26: #{tpu_custom_call.1} parent=0
    _
  %s5 = ssub.s32 1, %s3
  %s6 = scalar_select 0, %s5, %s3
  $region1: #{tpu_custom_call.1} parent=0
    #allocation2 [shape = 'u8[8192]{0}', space=vmem, size = 0x2000, scoped, tag = 'input window, operand 0, single buffered']
    #allocation3 [shape = 's32[1]{0}', space=sflag, size = 0x4, scoped, tag = 'scoped memory for tpu_custom_call.1']
    #allocation4 [shape = 's32[1]{0}', space=sflag, size = 0x4, scoped, tag = 'scoped memory for tpu_custom_call.1']
    #allocation5 [shape = 'u8[512]{0}', space=vmem, size = 0x400, scoped, tag = 'input window, operand 1, single buffered']
    #allocation6 [shape = 's32[1]{0}', space=sflag, size = 0x4, scoped, tag = 'scoped memory for tpu_custom_call.1']
    #allocation7 [shape = 'u8[8192]{0}', space=vmem, size = 0x2000, scoped, tag = 'output window, operand 0, single buffered']
    %7 = vsyncpa [#allocation3], 0
    %8 = vsyncpa [#allocation6], 0
    %9 = vsyncpa [#allocation4], 0
    // Predicated region
    $region2: #{tpu_custom_call.1} parent=1 // pred_check
      _
    $region3: #{tpu_custom_call.1} parent=1 // pred_check_branch
      %11 = sbr.rel (0) target = $region5
    $region4: #{tpu_custom_call.1} parent=1 // pred_region
      %13 = vsyncadd [#allocation3], 0
      %s14 = sshll.u32 %s0, 4
      %s15 = int_to_ptr.hbm [resolvable:$true] %s14
      %s16 = sshll.u32 [#allocation2], 4
      %s17 = int_to_ptr.vmem [resolvable:$true] %s16
      %22 = dma.hbm_to_vmem [thread:$0]  %s15, 256, %s17, [#allocation3], 128, 128, 8
    $region5: #{tpu_custom_call.1} parent=1 // pred_fallthru
      _
    // Predicated region
    $region6: #{tpu_custom_call.1} parent=1 // pred_check
      _
    $region7: #{tpu_custom_call.1} parent=1 // pred_check_branch
      %24 = sbr.rel (0) target = $region9
    $region8: #{tpu_custom_call.1} parent=1 // pred_region
      %26 = vsyncadd [#allocation6], 0
      %s28 = sshll.u32 %s1, 4
      %s29 = int_to_ptr.hbm [resolvable:$true] %s28
      %s30 = sshll.u32 [#allocation5], 4
      %s31 = int_to_ptr.vmem [resolvable:$true] %s30
      %33 = dma.hbm_to_vmem [thread:$0]  %s29, 16, %s31, [#allocation6]
    $region9: #{tpu_custom_call.1} parent=1 // pred_fallthru
      _
    // Predicated region
    $region10: #{tpu_custom_call.1} parent=1 // pred_check
      _
    $region11: #{tpu_custom_call.1} parent=1 // pred_check_branch
      %35 = sbr.rel (0) target = $region13
    $region12: #{tpu_custom_call.1} parent=1 // pred_region
      %37 = dma.done [#allocation3], 256
    $region13: #{tpu_custom_call.1} parent=1 // pred_fallthru
      _
    // Predicated region
    $region14: #{tpu_custom_call.1} parent=1 // pred_check
      _
    $region15: #{tpu_custom_call.1} parent=1 // pred_check_branch
      %39 = sbr.rel (0) target = $region17
    $region16: #{tpu_custom_call.1} parent=1 // pred_region
      %41 = dma.done [#allocation6], 16
    $region17: #{tpu_custom_call.1} parent=1 // pred_fallthru
      _
    %v42 = vld [vmem:[#allocation5] sm:$0x1]
    %v43 = vld [vmem:[#allocation2] sm:$0xff]
    %v44 = vld [vmem:[#allocation2 + $0x8] sm:$0xff]
    %v45 = vmul.f32 %v43, %v43
    %v46 = vmul.f32 %v44, %v44
    %47 = vadd.xlane.f32.xlu0 %v45
    %v48 = vpop.xlane.xlu0 %47
    %49 = vadd.xlane.f32.xlu0 %v46
    %v50 = vpop.xlane.xlu0 %49
    %v51 = vrcp.pop 128.0
    %v52 = vmul.f32 128.0, %v51
    %v53 = vsub.f32 1.0, %v52
    %v54 = vmul.f32 %v51, %v53
    %v55 = vadd.f32 %v51, %v54
    %vm56 = vweird.f32 %v51
    %v57 = vsel %vm56, %v51, %v55
    %v58 = vmul.f32 %v48, %v57
    %v59 = vmul.f32 %v50, %v57
    %v60 = vadd.f32 %v58, 1e-05
    %v61 = vadd.f32 %v59, 1e-05
    %v62 = vrsqrt.pop %v60
    %v63 = vmul.f32 %v62, %v60
    %v64 = vmul.f32 %v63, %v62
    %v65 = vmul.f32 0.5, %v64
    %v66 = vsub.f32 1.5, %v65
    %v67 = vmul.f32 %v62, %v66
    %vm68 = vweird.f32 %v60
    %vm69 = vweird.f32 %v62
    %vm70 = vmor %vm68, %vm69
    %v71 = vsel %vm70, %v62, %v67
    %v72 = vrsqrt.pop %v61
    %v73 = vmul.f32 %v72, %v61
    %v74 = vmul.f32 %v73, %v72
    %v75 = vmul.f32 0.5, %v74
    %v76 = vsub.f32 1.5, %v75
    %v77 = vmul.f32 %v72, %v76
    %vm78 = vweird.f32 %v61
    %vm79 = vweird.f32 %v72
    %vm80 = vmor %vm78, %vm79
    %v81 = vsel %vm80, %v72, %v77
    %v82 = vmul.f32 %v43, %v71
    %v83 = vmul.f32 %v44, %v81
    %v85 = vperm.slane %v42, 0
    %v87 = vmul.f32 %v82, %v85
    %v88 = vmul.f32 %v83, %v85
    %89 = vst [vmem:[#allocation7] sm:$0xff] %v87
    %90 = vst [vmem:[#allocation7 + $0x8] sm:$0xff] %v88
    // Predicated region
    $region18: #{tpu_custom_call.1} parent=1 // pred_check
      _
    $region19: #{tpu_custom_call.1} parent=1 // pred_check_branch
      %92 = sbr.rel (0) target = $region21
    $region20: #{tpu_custom_call.1} parent=1 // pred_region
      %94 = vsyncadd [#allocation4], 0
      %s95 = sshll.u32 [#allocation7], 4
      %s96 = int_to_ptr.vmem [resolvable:$true] %s95
      %s97 = sshll.u32 %s2, 4
      %s98 = int_to_ptr.hbm [resolvable:$true] %s97
      %103 = dma.vmem_to_hbm [thread:$0]  %s96, 256, %s98, [#allocation4], 128, 128, 8
    $region21: #{tpu_custom_call.1} parent=1 // pred_fallthru
      _
    // Predicated region
    $region22: #{tpu_custom_call.1} parent=1 // pred_check
      _
    $region23: #{tpu_custom_call.1} parent=1 // pred_check_branch
      %105 = sbr.rel (0) target = $region25
    $region24: #{tpu_custom_call.1} parent=1 // pred_region
      %107 = dma.done [#allocation4], 256
    $region25: #{tpu_custom_call.1} parent=1 // pred_fallthru
      _
    %108 = vsyncpa [#allocation3], 1
    %109 = vsyncpa [#allocation6], 1
    %110 = vsyncpa [#allocation4], 1

</llo_original>
